<compile_context>
chip_gen: v7x
topology: tpu7x:2x2x1
jax: 0.10.0
libtpu: 0.0.40
codegen_flags: <defaults>
</compile_context>

<pallas_src>
import jax
import jax.numpy as jnp
from jax.experimental import pallas as pl
from jax.experimental.pallas import tpu as pltpu

_PACK = 32  # input rows packed per 128-lane vreg row (128 lanes / 4 features)


def _net_kernel(w_ref, b_ref, x_ref, o_ref):
    # w_ref: VMEM (128, 32) fused para/selector weight (resident, fetched once)
    # b_ref: SMEM (1,)      bias scalar
    # x_ref: VMEM (TR, 128) packed input tile
    # o_ref: VMEM (TR, 32)  output tile (row j of o depends only on row j of x)
    o_ref[...] = (
        jnp.dot(x_ref[...], w_ref[...], preferred_element_type=jnp.float32)
        + b_ref[0]
    )


def _net_forward_aligned(x, para, buff, block_rows):
    """x: (M, 4) with M % 32 == 0. Returns (M, 1) float32."""
    M, K = x.shape
    R = M // _PACK
    xr = x.astype(jnp.float32).reshape(R, 128)  # row-major regroup, lane-dense

    # Fused weight: W[l, k] = para[l % 4] if l // 4 == k else 0  -> (128, 32)
    p = para.reshape(K).astype(jnp.float32)
    lane = jnp.arange(128)
    sel = (lane[:, None] // K) == jnp.arange(_PACK)[None, :]
    w = jnp.where(sel, p[lane % K][:, None], 0.0).astype(jnp.float32)
    b = buff.reshape(1).astype(jnp.float32)

    # Tile choice: big tiles amortize per-step overhead; use >= 2 tiles when
    # possible so the "parallel" grid can shard across v7x's two TensorCores.
    if R >= 16:
        half = ((R + 15) // 16) * 8           # ~ceil(R/2), multiple of 8
        tr = min(block_rows, half)
    else:
        tr = R                                # single full-extent block
    n_tiles = pl.cdiv(R, tr)

    out = pl.pallas_call(
        _net_kernel,
        out_shape=jax.ShapeDtypeStruct((R, _PACK), jnp.float32),
        grid=(n_tiles,),
        in_specs=[
            pl.BlockSpec((128, _PACK), lambda i: (0, 0)),        # W (resident)
            pl.BlockSpec(memory_space=pltpu.MemorySpace.SMEM),   # buff scalar
            pl.BlockSpec((tr, 128), lambda i: (i, 0)),           # x tile
        ],
        out_specs=pl.BlockSpec((tr, _PACK), lambda i: (i, 0)),
        compiler_params=pltpu.CompilerParams(
            dimension_semantics=("parallel",),
            vmem_limit_bytes=32 * 1024 * 1024,
        ),
        cost_estimate=pl.CostEstimate(
            flops=2 * M * K,
            bytes_accessed=(xr.size + R * _PACK + w.size + 1) * 4,
            transcendentals=0,
        ),
    )(w, b, xr)

    return out.reshape(M, 1)


def net_forward(x, para, buff, *, block_rows=8192):
    """Computes x @ para + buff for x: (M, 4), para: (4, 1), buff: (1, 1)."""
    M, K = x.shape
    assert K == 4 and para.shape == (K, 1) and buff.shape == (1, 1)

    m_main = (M // _PACK) * _PACK
    if m_main == 0:
        # Fewer than 32 rows: pad up to one packed row group (<= 31 rows, cheap).
        x_pad = jnp.pad(x, ((0, _PACK - M), (0, 0)))
        return _net_forward_aligned(x_pad, para, buff, block_rows)[:M]

    y_main = _net_forward_aligned(x[:m_main], para, buff, block_rows)
    if m_main == M:
        return y_main
    # Ragged tail (< 32 rows): plain jnp, avoids a full-array pad / extra HBM pass.
    x_tail = x[m_main:].astype(jnp.float32)
    y_tail = x_tail @ para.astype(jnp.float32) + buff.astype(jnp.float32)
    return jnp.concatenate([y_main, y_tail], axis=0)


if __name__ == "__main__":
    key = jax.random.PRNGKey(0)
    kp, kx1, kx2, kx3 = jax.random.split(key, 4)

    # Deterministic parameter init mirroring torch.rand((4, 1)) (uniform [0, 1)).
    para = jax.random.uniform(kp, (4, 1), dtype=jnp.float32)
    # buff = torch.tensor([[-1]]); it only participates in a float add.
    buff = jnp.array([[-1.0]], dtype=jnp.float32)

    fwd = jax.jit(net_forward, static_argnames=("block_rows",))

    # Small shape consistent with the module (last dim must be 4).
    M = 4096
    x = jax.random.normal(kx1, (M, 4), dtype=jnp.float32)
    out = jax.block_until_ready(fwd(x, para, buff))
    ref = x @ para + buff
    assert out.shape == (M, 1)
    assert jnp.allclose(out, ref, atol=1e-4), "mismatch vs reference (M=4096)"

    # Multi-tile grid + ragged last block + <32-row jnp tail path.
    M2 = 1000
    x2 = jax.random.normal(kx2, (M2, 4), dtype=jnp.float32)
    out2 = jax.block_until_ready(fwd(x2, para, buff, block_rows=16))
    ref2 = x2 @ para + buff
    assert out2.shape == (M2, 1)
    assert jnp.allclose(out2, ref2, atol=1e-4), "mismatch vs reference (M=1000)"

    # Tiny input (< 32 rows) exercising the pad-to-one-packed-row path.
    M3 = 8
    x3 = jax.random.normal(kx3, (M3, 4), dtype=jnp.float32)
    out3 = jax.block_until_ready(fwd(x3, para, buff))
    ref3 = x3 @ para + buff
    assert out3.shape == (M3, 1)
    assert jnp.allclose(out3, ref3, atol=1e-4), "mismatch vs reference (M=8)"

    # TODO(synk): the PyTorch forward also print()s para/buff; debug prints omitted.

    print("KERNEL_OK")
</pallas_src>

<mosaic_0001>
module attributes {stable_mosaic.version = 11 : i64} {
  func.func @_net_kernel(%arg0: i32, %arg1: memref<128x32xf32, #tpu.memory_space<vmem>>, %arg2: memref<1xf32, #tpu.memory_space<smem>>, %arg3: memref<64x128xf32, #tpu.memory_space<vmem>>, %arg4: memref<64x32xf32, #tpu.memory_space<vmem>>) attributes {dimension_semantics = [#tpu.dimension_semantics<parallel>], iteration_bounds = array<i64: 2>, scalar_prefetch = 0 : i64, scratch_operands = 0 : i64, tpu.core_type = #tpu.core_type<tc>, window_params = [{pipeline_mode = #tpu.pipeline_mode<synchronous>, transform_indices = @transform_0, window_bounds = array<i64: 128, 32>}, {transform_indices = @transform_1, window_bounds = array<i64: 1>}, {transform_indices = @transform_2, window_bounds = array<i64: 64, 128>}, {transform_indices = @transform_3, window_bounds = array<i64: 64, 32>}]} {
    %c0 = arith.constant 0 : index
    %c0_0 = arith.constant 0 : index
    %0 = vector.load %arg3[%c0, %c0_0] : memref<64x128xf32, #tpu.memory_space<vmem>>, vector<64x128xf32>
    %c0_1 = arith.constant 0 : index
    %c0_2 = arith.constant 0 : index
    %1 = vector.load %arg1[%c0_1, %c0_2] : memref<128x32xf32, #tpu.memory_space<vmem>>, vector<128x32xf32>
    %cst = arith.constant dense<0.000000e+00> : vector<64x32xf32>
    %2 = tpu.matmul %0, %1, %cst {dimension_numbers = #tpu.dot_dimension_numbers<[1], [0], [0], [1], [0, 0, 1, 1], [], []>} : vector<64x128xf32>, vector<128x32xf32>, vector<64x32xf32> -> vector<64x32xf32>
    %c0_3 = arith.constant 0 : index
    %3 = memref.load %arg2[%c0_3] : memref<1xf32, #tpu.memory_space<smem>>
    %4 = vector.broadcast %3 : f32 to vector<64x32xf32>
    %5 = arith.addf %2, %4 : vector<64x32xf32>
    %c0_4 = arith.constant 0 : index
    %c0_5 = arith.constant 0 : index
    %6 = vector.load %arg4[%c0_4, %c0_5] : memref<64x32xf32, #tpu.memory_space<vmem>>, vector<64x32xf32>
    tpu.vector_store %arg4[%c0_4, %c0_5], %5 {strides = array<i32>} : memref<64x32xf32, #tpu.memory_space<vmem>>, vector<64x32xf32>,
    return
  }
  func.func @transform_0(%arg0: i32) -> (i32, i32) {
    %c0_i32 = arith.constant 0 : i32
    %c0_i32_0 = arith.constant 0 : i32
    %c0_i32_1 = arith.constant 0 : i32
    return %c0_i32, %c0_i32_0 : i32, i32
  }
  func.func @transform_1(%arg0: i32) -> i32 {
    %c0_i32 = arith.constant 0 : i32
    %c0_i32_0 = arith.constant 0 : i32
    return %c0_i32 : i32
  }
  func.func @transform_2(%arg0: i32) -> (i32, i32) {
    %c0_i32 = arith.constant 0 : i32
    %c0_i32_0 = arith.constant 0 : i32
    return %arg0, %c0_i32 : i32, i32
  }
  func.func @transform_3(%arg0: i32) -> (i32, i32) {
    %c0_i32 = arith.constant 0 : i32
    %c0_i32_0 = arith.constant 0 : i32
    return %arg0, %c0_i32 : i32, i32
  }
}

</mosaic_0001>

<llo_original>
// kernel: net_forward.1
$region0: #{net_forward.1}
  #allocation0 [shape = 'u32[]', space=smem, size = 0x4, offset = 0x4, fixed_abs, tag = 'smem constant byte address 0x4 - core index']
  #allocation1 [shape = 'u32[144,128]{1,0:T(1,128)}', space=vmem, size = 0x12000, scoped, tag = 'internal scratch']
  #allocation2 [shape = 'f32[1]{0:T(128)S(6)}', space=smem, size = 0x200, scoped, tag = 'scoped memory for net_forward.1']
  %s0 = inlined_call_operand.vmem [shape: f32[128,32], index: 0, kind: input, shape index: {}]
  %s1 = inlined_call_operand.<no memory space> [shape: f32[1], index: 1, kind: input, shape index: {}]
  %s2 = inlined_call_operand.vmem [shape: f32[128,128], index: 2, kind: input, shape index: {}]
  %s3 = inlined_call_operand.vmem [shape: f32[128,32], index: 3, kind: output, shape index: {}]
  %s4 = sld [smem:[#allocation0]]
  $region45: #{net_forward.1} parent=0
    _
  %s6 = ssub.s32 1, %s4
  %s7 = scalar_select 0, %s6, %s4
  %8 = sst [smem:[#allocation2]] %s1
  loop: start=0, step=1, limit=4
  $region2: #{net_forward.1} parent=0 // loop_pre_header
    _
  $region3: #{net_forward.1} parent=0 // loop_header
    %s10 = sphi 0, %s14
    %p11 = scmp.ge.s32.totalorder %s10, 4
    %s18 = sphi 0, %s18
    %s20 = sphi 0, %s18
    %s21 = sphi 0, %s20
    %s35 = sphi 0, %s21
    %s39 = sphi 0, %s39
    %s41 = sphi 0, %s39
    %s42 = sphi 0, %s41
    %s56 = sphi 0, %s42
    %s62 = sphi 0, %s64
    %s65 = sphi 0, %s62
    %s66 = sphi 0, %s65
    %s82 = sphi 0, %s66
    %s88 = sphi 0, %s90
    %s91 = sphi 0, %s88
    %s92 = sphi 0, %s91
    %s108 = sphi 0, %s92
  $region4: #{net_forward.1} parent=0 // loop_header_branch
    %13 = sbr.rel (%p11) target = $region8
  $region5: #{net_forward.1} parent=0 // loop_body
    %s15 = ssub.s32 %s10, 1
    %s16 = ssub.s32 %s10, 2
    %s17 = sadd.s32 %s10, 1
    %s19 = sadd.s32 %s18, 1
    %p22 = scmp.eq.s32.totalorder %s10, 1
    %p23 = scmp.ne.s32.totalorder %s18, %s20
    %p24 = scmp.eq.s32.totalorder %s10, 0
    %p25 = por %p23, %p24
    %p26 = scmp.ne.s32.totalorder %s18, %s20
    %p27 = scmp.eq.s32.totalorder %s15, 1
    %p28 = por %p26, %p27
    %p29 = scmp.ne.s32.totalorder %s20, %s21
    %p30 = scmp.eq.s32.totalorder %s15, 0
    %p31 = por %p29, %p30
    %p32 = scmp.ne.s32.totalorder %s20, %s21
    %p33 = scmp.eq.s32.totalorder %s16, 1
    %p34 = por %p32, %p33
    %p36 = scmp.ne.s32.totalorder %s21, %s35
    %p37 = scmp.eq.s32.totalorder %s16, 0
    %p38 = por %p36, %p37
    %s40 = sadd.s32 %s39, 1
    %p43 = scmp.eq.s32.totalorder %s10, 1
    %p44 = scmp.ne.s32.totalorder %s39, %s41
    %p45 = scmp.eq.s32.totalorder %s10, 0
    %p46 = por %p44, %p45
    %p47 = scmp.ne.s32.totalorder %s39, %s41
    %p48 = scmp.eq.s32.totalorder %s15, 1
    %p49 = por %p47, %p48
    %p50 = scmp.ne.s32.totalorder %s41, %s42
    %p51 = scmp.eq.s32.totalorder %s15, 0
    %p52 = por %p50, %p51
    %p53 = scmp.ne.s32.totalorder %s41, %s42
    %p54 = scmp.eq.s32.totalorder %s16, 1
    %p55 = por %p53, %p54
    %p57 = scmp.ne.s32.totalorder %s42, %s56
    %p58 = scmp.eq.s32.totalorder %s16, 0
    %p59 = por %p57, %p58
    %s60 = ssub.s32 %s10, %s17
    %p61 = scmp.eq.s32.totalorder %s60, 0
    %s63 = sadd.s32 %s62, 1
    %s64 = scalar_select %p61, %s62, %s63
    %p67 = pneg %p61
    %p68 = scmp.eq.s32.totalorder %s10, 1
    %p69 = por %p67, %p68
    %p70 = scmp.ne.s32.totalorder %s62, %s65
    %p71 = scmp.eq.s32.totalorder %s10, 0
    %p72 = por %p70, %p71
    %p73 = scmp.ne.s32.totalorder %s62, %s65
    %p74 = scmp.eq.s32.totalorder %s15, 1
    %p75 = por %p73, %p74
    %p76 = scmp.ne.s32.totalorder %s65, %s66
    %p77 = scmp.eq.s32.totalorder %s15, 0
    %p78 = por %p76, %p77
    %p79 = scmp.ne.s32.totalorder %s65, %s66
    %p80 = scmp.eq.s32.totalorder %s16, 1
    %p81 = por %p79, %p80
    %p83 = scmp.ne.s32.totalorder %s66, %s82
    %p84 = scmp.eq.s32.totalorder %s16, 0
    %p85 = por %p83, %p84
    %s86 = ssub.s32 %s10, %s17
    %p87 = scmp.eq.s32.totalorder %s86, 0
    %s89 = sadd.s32 %s88, 1
    %s90 = scalar_select %p87, %s88, %s89
    %p93 = pneg %p87
    %p94 = scmp.eq.s32.totalorder %s10, 1
    %p95 = por %p93, %p94
    %p96 = scmp.ne.s32.totalorder %s88, %s91
    %p97 = scmp.eq.s32.totalorder %s10, 0
    %p98 = por %p96, %p97
    %p99 = scmp.ne.s32.totalorder %s88, %s91
    %p100 = scmp.eq.s32.totalorder %s15, 1
    %p101 = por %p99, %p100
    %p102 = scmp.ne.s32.totalorder %s91, %s92
    %p103 = scmp.eq.s32.totalorder %s15, 0
    %p104 = por %p102, %p103
    %p105 = scmp.ne.s32.totalorder %s91, %s92
    %p106 = scmp.eq.s32.totalorder %s16, 1
    %p107 = por %p105, %p106
    %p109 = scmp.ne.s32.totalorder %s92, %s108
    %p110 = scmp.eq.s32.totalorder %s16, 0
    %p111 = por %p109, %p110
    %p112 = scmp.le.s32.totalorder 1, %s10
    %p113 = scmp.lt.s32.totalorder %s10, 3
    %p114 = pnand %p112, %p113
    %p115 = pneg %p114
    // Predicated region
    $region9: #{net_forward.1} parent=5 // pred_check
      _
    $region10: #{net_forward.1} parent=5 // pred_check_branch
      %117 = sbr.rel (%p114) target = $region12
    $region11: #{net_forward.1} parent=5 // pred_region
      %s118 = ssub.s32 %s10, 1
      // Predicated region
      $region13: #{net_forward.1} parent=11 // pred_check
        %p119 = pneg %p31
      $region14: #{net_forward.1} parent=11 // pred_check_branch
        %121 = sbr.rel (%p119) target = $region16
      $region15: #{net_forward.1} parent=11 // pred_region
        _
      $region16: #{net_forward.1} parent=11 // pred_fallthru
        _
      // Predicated region
      $region17: #{net_forward.1} parent=11 // pred_check
        %p122 = pneg %p52
      $region18: #{net_forward.1} parent=11 // pred_check_branch
        %124 = sbr.rel (%p122) target = $region20
      $region19: #{net_forward.1} parent=11 // pred_region
        _
      $region20: #{net_forward.1} parent=11 // pred_fallthru
        _
    $region12: #{net_forward.1} parent=5 // pred_fallthru
      _
    %p125 = scmp.lt.s32.totalorder %s10, 2
    // Predicated region
    $region21: #{net_forward.1} parent=5 // pred_check
      %p126 = pneg %p125
    $region22: #{net_forward.1} parent=5 // pred_check_branch
      %128 = sbr.rel (%p126) target = $region24
    $region23: #{net_forward.1} parent=5 // pred_region
      // Predicated region
      $region25: #{net_forward.1} parent=23 // pred_check
        %p129 = pneg %p72
      $region26: #{net_forward.1} parent=23 // pred_check_branch
        %131 = sbr.rel (%p129) target = $region28
      $region27: #{net_forward.1} parent=23 // pred_region
        %s132 = smul.u32 8, %s10
        %p133 = scmp.lt.s32.totalorder %s132, 15
        %s134 = scalar_select %p133, %s132, 15
        %s135 = smul.addr %s134, 8
        %s136 = scalar_lea.vmem %s2, %s135
        %s137 = smul.u32 8, %s10
      $region28: #{net_forward.1} parent=23 // pred_fallthru
        _
    $region24: #{net_forward.1} parent=5 // pred_fallthru
      _
    %p138 = scmp.le.s32.totalorder 1, %s10
    %p139 = scmp.lt.s32.totalorder %s10, 3
    %p140 = pnand %p138, %p139
    %p141 = pneg %p140
    // Predicated region
    $region29: #{net_forward.1} parent=5 // pred_check
      _
    $region30: #{net_forward.1} parent=5 // pred_check_branch
      %143 = sbr.rel (%p140) target = $region32
    $region31: #{net_forward.1} parent=5 // pred_region
      %s144 = ssub.s32 %s10, 1
      %p145 = pneg %p31
      %p146 = pneg %p28
      %p147 = pneg %p52
      %p148 = pneg %p49
      %s149 = smul.u32 8, %s15
      %p150 = scmp.lt.s32.totalorder %s149, 15
      %s151 = scalar_select %p150, %s149, 15
      %s152 = smul.addr %s151, 8
      %s153 = scalar_lea.vmem %s2, %s152
      %p154 = pneg %p78
      %p155 = pneg %p75
      %p156 = pneg %p104
      %p157 = pneg %p101
      %s158 = smul.u32 8, %s15
      %p159 = scmp.lt.s32.totalorder %s158, 15
      %s160 = scalar_select %p159, %s158, 15
      %s161 = smul.addr %s160, 8
      %s162 = scalar_lea.vmem %s3, %s161
      %s163 = smul.u32 8, %s15
      %p164 = scmp.lt.s32.totalorder %s163, 15
      %s165 = scalar_select %p164, %s163, 15
      %s166 = smul.addr %s165, 8
      %s167 = scalar_lea.vmem %s2, %s166
      %s168 = smul.u32 8, %s15
      %s169 = smul.u32 8, %s15
      %p170 = scmp.lt.s32.totalorder %s169, 15
      %s171 = scalar_select %p170, %s169, 15
      %s172 = smul.addr %s171, 8
      %s173 = scalar_lea.vmem %s3, %s172
      %s174 = smul.u32 8, %s15
      %v175 = vld [vmem:[%s167] sm:$0xff]
      %v176 = vld [vmem:[%s167 + $0x8] sm:$0xff]
      %v177 = vld [vmem:[%s167 + $0x10] sm:$0xff]
      %v178 = vld [vmem:[%s167 + $0x18] sm:$0xff]
      %v179 = vld [vmem:[%s167 + $0x20] sm:$0xff]
      %v180 = vld [vmem:[%s167 + $0x28] sm:$0xff]
      %v181 = vld [vmem:[%s167 + $0x30] sm:$0xff]
      %v182 = vld [vmem:[%s167 + $0x38] sm:$0xff]
      %v183 = vld [vmem:[%s0] sm:$0xff]
      %v184 = vld [vmem:[%s0 + $0x8] sm:$0xff]
      %v185 = vld [vmem:[%s0 + $0x10] sm:$0xff]
      %v186 = vld [vmem:[%s0 + $0x18] sm:$0xff]
      %v187 = vld [vmem:[%s0 + $0x20] sm:$0xff]
      %v188 = vld [vmem:[%s0 + $0x28] sm:$0xff]
      %v189 = vld [vmem:[%s0 + $0x30] sm:$0xff]
      %v190 = vld [vmem:[%s0 + $0x38] sm:$0xff]
      %v191 = vld [vmem:[%s0 + $0x40] sm:$0xff]
      %v192 = vld [vmem:[%s0 + $0x48] sm:$0xff]
      %v193 = vld [vmem:[%s0 + $0x50] sm:$0xff]
      %v194 = vld [vmem:[%s0 + $0x58] sm:$0xff]
      %v195 = vld [vmem:[%s0 + $0x60] sm:$0xff]
      %v196 = vld [vmem:[%s0 + $0x68] sm:$0xff]
      %v197 = vld [vmem:[%s0 + $0x70] sm:$0xff]
      %v198 = vld [vmem:[%s0 + $0x78] sm:$0xff]
      %s199 = sld [smem:[#allocation2]]
      %v200 = vstv %s199
      %201 = vmatprep.subr.mxu0 0.0
      %202 = vmatpush1.msra.mxu0 %v183
      %203 = vmatprep.subr.mxu0 0.0
      %204 = vmatpush1.msra.mxu0 %v184
      %205 = vmatprep.subr.mxu0 0.0
      %206 = vmatpush1.msra.mxu0 %v185
      %207 = vmatprep.subr.mxu0 0.0
      %208 = vmatpush1.msra.mxu0 %v186
      %209 = vmatprep.subr.mxu0 0.0
      %210 = vmatpush1.msra.mxu0 %v187
      %211 = vmatprep.subr.mxu0 0.0
      %212 = vmatpush1.msra.mxu0 %v188
      %213 = vmatprep.subr.mxu0 0.0
      %214 = vmatpush1.msra.mxu0 %v189
      %215 = vmatprep.subr.mxu0 0.0
      %216 = vmatpush1.msra.mxu0 %v190
      %217 = vmatprep.subr.mxu0 0.0
      %218 = vmatpush1.msra.mxu0 %v191
      %219 = vmatprep.subr.mxu0 0.0
      %220 = vmatpush1.msra.mxu0 %v192
      %221 = vmatprep.subr.mxu0 0.0
      %222 = vmatpush1.msra.mxu0 %v193
      %223 = vmatprep.subr.mxu0 0.0
      %224 = vmatpush1.msra.mxu0 %v194
      %225 = vmatprep.subr.mxu0 0.0
      %226 = vmatpush1.msra.mxu0 %v195
      %227 = vmatprep.subr.mxu0 0.0
      %228 = vmatpush1.msra.mxu0 %v196
      %229 = vmatprep.subr.mxu0 0.0
      %230 = vmatpush1.msra.mxu0 %v197
      %231 = vmatprep.subr.mxu0 0.0
      %232 = vmatpush1.msra.mxu0 %v198
      %233 = vmatprep.subr.mxu0 0.0
      %234 = vmatpush1.msra.mxu0 0.0
      %235 = vmatprep.subr.mxu0 0.0
      %236 = vmatpush1.msra.mxu0 0.0
      %237 = vmatprep.subr.mxu0 0.0
      %238 = vmatpush1.msra.mxu0 0.0
      %239 = vmatprep.subr.mxu0 0.0
      %240 = vmatpush1.msra.mxu0 0.0
      %241 = vmatprep.subr.mxu0 0.0
      %242 = vmatpush1.msra.mxu0 0.0
      %243 = vmatprep.subr.mxu0 0.0
      %244 = vmatpush1.msra.mxu0 0.0
      %245 = vmatprep.subr.mxu0 0.0
      %246 = vmatpush1.msra.mxu0 0.0
      %247 = vmatprep.subr.mxu0 0.0
      %248 = vmatpush1.msra.mxu0 0.0
      %249 = vmatprep.subr.mxu0 0.0
      %250 = vmatpush1.msra.mxu0 0.0
      %251 = vmatprep.subr.mxu0 0.0
      %252 = vmatpush1.msra.mxu0 0.0
      %253 = vmatprep.subr.mxu0 0.0
      %254 = vmatpush1.msra.mxu0 0.0
      %255 = vmatprep.subr.mxu0 0.0
      %256 = vmatpush1.msra.mxu0 0.0
      %257 = vmatprep.subr.mxu0 0.0
      %258 = vmatpush1.msra.mxu0 0.0
      %259 = vmatprep.subr.mxu0 0.0
      %260 = vmatpush1.msra.mxu0 0.0
      %261 = vmatprep.subr.mxu0 0.0
      %262 = vmatpush1.msra.mxu0 0.0
      %263 = vmatprep.subr.mxu0 0.0
      %264 = vmatpush1.msra.mxu0 0.0
      %265 = vmatprep.mubr.f32.mxu0 0.0
      %266 = vmatmul.mubr.f32.gmra.mrb[0].mxu0 %v175
      %v267 = vpop.f32.mrb[0].mxu0
      %v268 = vadd.f32 %v200, %v267
      %v269 = vpop.f32.mrb[0].mxu0
      %270 = vmatprep.mubr.f32.mxu0 0.0
      %271 = vmatmul.mubr.f32.gmra.mrb[0].mxu0 %v176
      %v272 = vpop.f32.mrb[0].mxu0
      %v273 = vadd.f32 %v200, %v272
      %v274 = vpop.f32.mrb[0].mxu0
      %275 = vmatprep.mubr.f32.mxu0 0.0
      %276 = vmatmul.mubr.f32.gmra.mrb[0].mxu0 %v177
      %v277 = vpop.f32.mrb[0].mxu0
      %v278 = vadd.f32 %v200, %v277
      %v279 = vpop.f32.mrb[0].mxu0
      %280 = vmatprep.mubr.f32.mxu0 0.0
      %281 = vmatmul.mubr.f32.gmra.mrb[0].mxu0 %v178
      %v282 = vpop.f32.mrb[0].mxu0
      %v283 = vadd.f32 %v200, %v282
      %v284 = vpop.f32.mrb[0].mxu0
      %285 = vmatprep.mubr.f32.mxu0 0.0
      %286 = vmatmul.mubr.f32.gmra.mrb[0].mxu0 %v179
      %v287 = vpop.f32.mrb[0].mxu0
      %v288 = vadd.f32 %v200, %v287
      %v289 = vpop.f32.mrb[0].mxu0
      %290 = vmatprep.mubr.f32.mxu0 0.0
      %291 = vmatmul.mubr.f32.gmra.mrb[0].mxu0 %v180
      %v292 = vpop.f32.mrb[0].mxu0
      %v293 = vadd.f32 %v200, %v292
      %v294 = vpop.f32.mrb[0].mxu0
      %295 = vmatprep.mubr.f32.mxu0 0.0
      %296 = vmatmul.mubr.f32.gmra.mrb[0].mxu0 %v181
      %v297 = vpop.f32.mrb[0].mxu0
      %v298 = vadd.f32 %v200, %v297
      %v299 = vpop.f32.mrb[0].mxu0
      %300 = vmatprep.mubr.f32.mxu0 0.0
      %301 = vmatmul.mubr.f32.gmra.mrb[0].mxu0 %v182
      %v302 = vpop.f32.mrb[0].mxu0
      %v303 = vadd.f32 %v200, %v302
      %v304 = vpop.f32.mrb[0].mxu0
      %305 = vdwg.mxu0
      %vm306 = vcmask 261120
      %307 = vst.msk [vmem:[%s173] sm:$0xff] %vm306, %v268
      %308 = vst.msk [vmem:[%s173 + $0x8] sm:$0xff] %vm306, %v273
      %309 = vst.msk [vmem:[%s173 + $0x10] sm:$0xff] %vm306, %v278
      %310 = vst.msk [vmem:[%s173 + $0x18] sm:$0xff] %vm306, %v283
      %311 = vst.msk [vmem:[%s173 + $0x20] sm:$0xff] %vm306, %v288
      %312 = vst.msk [vmem:[%s173 + $0x28] sm:$0xff] %vm306, %v293
      %313 = vst.msk [vmem:[%s173 + $0x30] sm:$0xff] %vm306, %v298
      %314 = vst.msk [vmem:[%s173 + $0x38] sm:$0xff] %vm306, %v303
      %s315 = smul.u32 8, %s15
      %p316 = scmp.lt.s32.totalorder %s315, 15
      %s317 = scalar_select %p316, %s315, 15
      %s318 = smul.addr %s317, 8
      %s319 = scalar_lea.vmem %s3, %s318
      // Predicated region
      $region33: #{net_forward.1} parent=31 // pred_check
        %p320 = pneg %p101
      $region34: #{net_forward.1} parent=31 // pred_check_branch
        %322 = sbr.rel (%p320) target = $region36
      $region35: #{net_forward.1} parent=31 // pred_region
        %s323 = smul.u32 8, %s15
      $region36: #{net_forward.1} parent=31 // pred_fallthru
        _
    $region32: #{net_forward.1} parent=5 // pred_fallthru
      _
    %p324 = scmp.le.s32.totalorder 2, %s10
    // Predicated region
    $region37: #{net_forward.1} parent=5 // pred_check
      %p325 = pneg %p324
    $region38: #{net_forward.1} parent=5 // pred_check_branch
      %327 = sbr.rel (%p325) target = $region40
    $region39: #{net_forward.1} parent=5 // pred_region
      %s328 = ssub.s32 %s10, 2
      // Predicated region
      $region41: #{net_forward.1} parent=39 // pred_check
        %p329 = pneg %p107
      $region42: #{net_forward.1} parent=39 // pred_check_branch
        %331 = sbr.rel (%p329) target = $region44
      $region43: #{net_forward.1} parent=39 // pred_region
        %s332 = smul.u32 8, %s16
        %p333 = scmp.lt.s32.totalorder %s332, 15
        %s334 = scalar_select %p333, %s332, 15
        %s335 = smul.addr %s334, 8
        %s336 = scalar_lea.vmem %s3, %s335
      $region44: #{net_forward.1} parent=39 // pred_fallthru
        _
    $region40: #{net_forward.1} parent=5 // pred_fallthru
      _
  $region6: #{net_forward.1} parent=0 // loop_footer
    %s14 = sadd.s32 1, %s10
  $region7: #{net_forward.1} parent=0 // loop_footer_branch
    %9 = sbr.rel target = $region3
  $region8: #{net_forward.1} parent=0 // loop_exit
    _

</llo_original>
